<compile_context>
chip_gen: v5e
topology: v5e:2x2
jax: 0.10.0
libtpu: 0.0.40
codegen_flags: <defaults>
</compile_context>

<pallas_src>
import functools

import jax
import jax.numpy as jnp
import numpy as np
from jax import lax
from jax.experimental import pallas as pl
from jax.experimental.pallas import tpu as pltpu


def _fourier_encoder_kernel(ptsT_ref, fcol_ref, w_ref, o_ref):
    p = ptsT_ref[...]                                   # (3, tm)  f32, lane-dense
    f = fcol_ref[...]                                   # (8, 1)   2^k column
    # Phases, lane-dense: x24[c*8 + k, :] = p[c, :] * 2**k  ->  (24, tm).
    # Pure VPU broadcast-multiplies; all concat chunks are 8-sublane aligned.
    x24 = jnp.concatenate([p[0:1] * f, p[1:2] * f, p[2:3] * f], axis=0)
    ones = jnp.ones((1, p.shape[1]), jnp.float32)
    # Feature rows: [sin(24) | cos(24) | pts(3) | ones(1)]  ->  (52, tm)
    featT = jnp.concatenate([jnp.sin(x24), jnp.cos(x24), p, ones], axis=0)
    # Fused projection + bias (via the ones row): contract featT dim 0 with the
    # packed weight dim 0 -> (tm, hidden).  The LHS transpose needed to feed
    # the MXU goes through the XLU (separate slot, hidden under VPU work).
    o_ref[...] = lax.dot_general(
        featT, w_ref[...],
        dimension_numbers=(((0,), (0,)), ((), ())),
        preferred_element_type=jnp.float32).astype(o_ref.dtype)


def _pick_tm(m, hidden):
    """Largest 128-multiple row tile whose VMEM footprint stays ~<=12 MiB.

    Per-row f32 bytes: output (double-buffered) 2*hidden, input 2*3, plus
    in-kernel intermediates x24/sin/cos (~3*24) and featT + transpose (~2*52).
    """
    per_row = 4 * (2 * hidden + 2 * 3 + 3 * 24 + 2 * 52)
    tm = (12 * 1024 * 1024) // per_row
    tm = max(128, min(tm, 8192))
    return (tm // 128) * 128


@functools.partial(jax.jit, static_argnames=("tm",))
def fourier_point_encoder(points, weight, bias, *, tm=None):
    """points: (..., 3); weight: (hidden, 51); bias: (hidden,) -> (..., hidden) f32."""
    hidden = weight.shape[0]
    lead = points.shape[:-1]
    m = int(np.prod(lead)) if lead else 1

    # Transposed, lane-dense point layout (tiny wrapper transpose: 12 B/row).
    ptsT = points.reshape(m, 3).astype(jnp.float32).T            # (3, m)

    tm_eff = _pick_tm(m, hidden) if tm is None else int(tm)
    if tm_eff >= m:
        tm_eff = m                     # single block; block dims == array dims
    else:
        tm_eff = max(128, (tm_eff // 128) * 128)   # lane-dim block needs 128-align
    # Ragged last block: OOB lanes read garbage, matching output rows masked.
    grid = (pl.cdiv(m, tm_eff),)

    # 2^k column consumed by the kernel's broadcast multiply (exact powers of 2).
    fcol = jnp.asarray((2.0 ** np.arange(8, dtype=np.float32)).reshape(8, 1))

    # Packed projection (52, hidden) matching featT row order [sin|cos|pts|1];
    # the last row is the bias (folded in through the ones feature row).
    wt = weight.astype(jnp.float32).T                            # (51, hidden)
    w_packed = jnp.concatenate(
        [wt[3:27],                                               # sin weights
         wt[27:51],                                              # cos weights
         wt[0:3],                                                # raw-point weights
         bias.astype(jnp.float32).reshape(1, hidden)], axis=0)   # bias row

    out = pl.pallas_call(
        _fourier_encoder_kernel,
        out_shape=jax.ShapeDtypeStruct((m, hidden), jnp.float32),
        grid_spec=pltpu.PrefetchScalarGridSpec(
            num_scalar_prefetch=0,
            grid=grid,
            in_specs=[
                pl.BlockSpec((3, tm_eff), lambda i: (0, i)),     # points, lane-dense
                pl.BlockSpec((8, 1), lambda i: (0, 0)),          # 2^k column
                pl.BlockSpec((52, hidden), lambda i: (0, 0)),    # packed W + bias
            ],
            out_specs=pl.BlockSpec((tm_eff, hidden), lambda i: (i, 0)),
        ),
        compiler_params=pltpu.CompilerParams(
            dimension_semantics=("parallel",)),   # shards rows across 2 TCs on v7x
    )(ptsT, fcol, w_packed)

    return out.reshape(*lead, hidden)


def _reference(points, weight, bias):
    """Pure-JAX mirror of the PyTorch forward (for verification)."""
    freqs = 2.0 ** jnp.arange(8, dtype=jnp.float32)
    x = (points[..., None] * freqs).reshape(*points.shape[:-1], -1)    # (..., 24)
    feat = jnp.concatenate([points, jnp.sin(x), jnp.cos(x)], axis=-1)  # (..., 51)
    return feat @ weight.T + bias


if __name__ == "__main__":
    hidden_size = 32
    B, N = 2, 8   # points: (batch=2, seq=8, 3)

    key = jax.random.PRNGKey(0)
    k_pts, k_w, k_b, k_pts2 = jax.random.split(key, 4)

    points = jax.random.normal(k_pts, (B, N, 3), dtype=jnp.float32)

    # Deterministic nn.Linear(51, hidden)-style init: U(-1/sqrt(51), 1/sqrt(51)).
    bound = 1.0 / np.sqrt(51.0)
    weight = jax.random.uniform(k_w, (hidden_size, 51), jnp.float32,
                                minval=-bound, maxval=bound)
    bias = jax.random.uniform(k_b, (hidden_size,), jnp.float32,
                              minval=-bound, maxval=bound)

    out = jax.block_until_ready(fourier_point_encoder(points, weight, bias))
    ref = _reference(points, weight, bias)
    np.testing.assert_allclose(np.asarray(out), np.asarray(ref),
                               rtol=1e-4, atol=1e-4)
    assert out.shape == (B, N, hidden_size)

    # Second check: multi-step grid with a ragged last block (m=300 rows,
    # forced 128-row tile -> grid of 3, tail block of 44 rows, no padding).
    points2 = jax.random.normal(k_pts2, (30, 10, 3), dtype=jnp.float32)
    out2 = jax.block_until_ready(
        fourier_point_encoder(points2, weight, bias, tm=128))
    ref2 = _reference(points2, weight, bias)
    np.testing.assert_allclose(np.asarray(out2), np.asarray(ref2),
                               rtol=1e-4, atol=1e-4)
    assert out2.shape == (30, 10, hidden_size)

    print("KERNEL_OK")
</pallas_src>

<mosaic_0001>
module attributes {stable_mosaic.version = 11 : i64} {
  func.func @_fourier_encoder_kernel(%arg0: i32, %arg1: memref<3x16xf32, #tpu.memory_space<vmem>>, %arg2: memref<8x1xf32, #tpu.memory_space<vmem>>, %arg3: memref<52x32xf32, #tpu.memory_space<vmem>>, %arg4: memref<16x32xf32, #tpu.memory_space<vmem>>) attributes {dimension_semantics = [#tpu.dimension_semantics<parallel>], iteration_bounds = array<i64: 1>, scalar_prefetch = 0 : i64, scratch_operands = 0 : i64, tpu.core_type = #tpu.core_type<tc>, window_params = [{transform_indices = @transform_0, window_bounds = array<i64: 3, 16>}, {pipeline_mode = #tpu.pipeline_mode<synchronous>, transform_indices = @transform_1, window_bounds = array<i64: 8, 1>}, {pipeline_mode = #tpu.pipeline_mode<synchronous>, transform_indices = @transform_2, window_bounds = array<i64: 52, 32>}, {transform_indices = @transform_3, window_bounds = array<i64: 16, 32>}]} {
    %c0 = arith.constant 0 : index
    %c0_0 = arith.constant 0 : index
    %0 = vector.load %arg1[%c0, %c0_0] : memref<3x16xf32, #tpu.memory_space<vmem>>, vector<3x16xf32>
    %c0_1 = arith.constant 0 : index
    %c0_2 = arith.constant 0 : index
    %1 = vector.load %arg2[%c0_1, %c0_2] : memref<8x1xf32, #tpu.memory_space<vmem>>, vector<8x1xf32>
    %2 = vector.extract_strided_slice %0 {offsets = [0, 0], sizes = [1, 16], strides = [1, 1]} : vector<3x16xf32> to vector<1x16xf32>
    %3 = vector.broadcast %2 : vector<1x16xf32> to vector<8x16xf32>
    %4 = vector.broadcast %1 : vector<8x1xf32> to vector<8x16xf32>
    %5 = arith.mulf %3, %4 : vector<8x16xf32>
    %6 = vector.extract_strided_slice %0 {offsets = [1, 0], sizes = [1, 16], strides = [1, 1]} : vector<3x16xf32> to vector<1x16xf32>
    %7 = vector.broadcast %6 : vector<1x16xf32> to vector<8x16xf32>
    %8 = vector.broadcast %1 : vector<8x1xf32> to vector<8x16xf32>
    %9 = arith.mulf %7, %8 : vector<8x16xf32>
    %10 = vector.extract_strided_slice %0 {offsets = [2, 0], sizes = [1, 16], strides = [1, 1]} : vector<3x16xf32> to vector<1x16xf32>
    %11 = vector.broadcast %10 : vector<1x16xf32> to vector<8x16xf32>
    %12 = vector.broadcast %1 : vector<8x1xf32> to vector<8x16xf32>
    %13 = arith.mulf %11, %12 : vector<8x16xf32>
    %14 = tpu.concatenate %5, %9, %13 in 0 : vector<8x16xf32>, vector<8x16xf32>, vector<8x16xf32> -> vector<24x16xf32>
    %cst = arith.constant 1.000000e+00 : f32
    %15 = vector.broadcast %cst : f32 to vector<1x16xf32>
    %16 = math.sin %14 : vector<24x16xf32>
    %17 = math.cos %14 : vector<24x16xf32>
    %18 = tpu.concatenate %16, %17, %0, %15 in 0 : vector<24x16xf32>, vector<24x16xf32>, vector<3x16xf32>, vector<1x16xf32> -> vector<52x16xf32>
    %c0_3 = arith.constant 0 : index
    %c0_4 = arith.constant 0 : index
    %19 = vector.load %arg3[%c0_3, %c0_4] : memref<52x32xf32, #tpu.memory_space<vmem>>, vector<52x32xf32>
    %cst_5 = arith.constant dense<0.000000e+00> : vector<16x32xf32>
    %20 = tpu.matmul %18, %19, %cst_5 {dimension_numbers = #tpu.dot_dimension_numbers<[0], [0], [1], [1], [0, 1, 1, 1], [], []>} : vector<52x16xf32>, vector<52x32xf32>, vector<16x32xf32> -> vector<16x32xf32>
    %c0_6 = arith.constant 0 : index
    %c0_7 = arith.constant 0 : index
    %21 = vector.load %arg4[%c0_6, %c0_7] : memref<16x32xf32, #tpu.memory_space<vmem>>, vector<16x32xf32>
    tpu.vector_store %arg4[%c0_6, %c0_7], %20 {strides = array<i32>} : memref<16x32xf32, #tpu.memory_space<vmem>>, vector<16x32xf32>,
    return
  }
  func.func @transform_0(%arg0: i32) -> (i32, i32) {
    %c0_i32 = arith.constant 0 : i32
    %c0_i32_0 = arith.constant 0 : i32
    return %c0_i32, %arg0 : i32, i32
  }
  func.func @transform_1(%arg0: i32) -> (i32, i32) {
    %c0_i32 = arith.constant 0 : i32
    %c0_i32_0 = arith.constant 0 : i32
    %c0_i32_1 = arith.constant 0 : i32
    return %c0_i32, %c0_i32_0 : i32, i32
  }
  func.func @transform_2(%arg0: i32) -> (i32, i32) {
    %c0_i32 = arith.constant 0 : i32
    %c0_i32_0 = arith.constant 0 : i32
    %c0_i32_1 = arith.constant 0 : i32
    return %c0_i32, %c0_i32_0 : i32, i32
  }
  func.func @transform_3(%arg0: i32) -> (i32, i32) {
    %c0_i32 = arith.constant 0 : i32
    %c0_i32_0 = arith.constant 0 : i32
    return %arg0, %c0_i32 : i32, i32
  }
}

</mosaic_0001>

<llo_original>
// kernel: fourier_point_encoder.1
$region0: #{fourier_point_encoder.1}
  #allocation0 [shape = 'u32[]', space=smem, size = 0x4, offset = 0x4, fixed_abs, tag = 'smem constant byte address 0x4 - core index']
  #allocation1 [shape = 'u32[72,128]{1,0:T(1,128)}', space=vmem, size = 0x9000, scoped, tag = 'internal scratch']
  %s0 = inlined_call_operand.vmem [shape: f32[3,16], index: 0, kind: input, shape index: {}]
  %s1 = inlined_call_operand.vmem [shape: f32[8,1], index: 1, kind: input, shape index: {}]
  %s2 = inlined_call_operand.vmem [shape: f32[52,32], index: 2, kind: input, shape index: {}]
  %s3 = inlined_call_operand.hbm [shape: f32[16,32], index: 3, kind: output, shape index: {}]
  %s4 = sld [smem:[#allocation0]]
  $region22: #{fourier_point_encoder.1} parent=0
    _
  %s6 = ssub.s32 1, %s4
  %s7 = scalar_select 0, %s6, %s4
  $region1: #{fourier_point_encoder.1} parent=0
    #allocation2 [shape = 'u8[8192]{0}', space=vmem, size = 0x2000, scoped, tag = 'output window, operand 0, single buffered']
    #allocation3 [shape = 's32[1]{0}', space=sflag, size = 0x4, scoped, tag = 'scoped memory for fourier_point_encoder.1']
    %8 = vsyncpa [#allocation3], 0
    // Predicated region
    $region2: #{fourier_point_encoder.1} parent=1 // pred_check
      _
    $region3: #{fourier_point_encoder.1} parent=1 // pred_check_branch
      %10 = sbr.rel (0) target = $region5
    $region4: #{fourier_point_encoder.1} parent=1 // pred_region
      _
    $region5: #{fourier_point_encoder.1} parent=1 // pred_fallthru
      _
    // Predicated region
    $region6: #{fourier_point_encoder.1} parent=1 // pred_check
      _
    $region7: #{fourier_point_encoder.1} parent=1 // pred_check_branch
      %12 = sbr.rel (0) target = $region9
    $region8: #{fourier_point_encoder.1} parent=1 // pred_region
      _
    $region9: #{fourier_point_encoder.1} parent=1 // pred_fallthru
      _
    // Predicated region
    $region10: #{fourier_point_encoder.1} parent=1 // pred_check
      _
    $region11: #{fourier_point_encoder.1} parent=1 // pred_check_branch
      %14 = sbr.rel (0) target = $region13
    $region12: #{fourier_point_encoder.1} parent=1 // pred_region
      _
    $region13: #{fourier_point_encoder.1} parent=1 // pred_fallthru
      _
    %v15 = vld [vmem:[%s0] sm:$0x7]
    %v16 = vld [vmem:[%s1] sm:$0xff]
    %v17 = vperm.slane %v15, 0
    %19 = vset.pattern.permute.xlu0 0
    %20 = vperm.xlu0 %19, %v16
    %v21 = vpop.permute.xlu0 %20
    %v23 = vmul.f32 %v17, %v21
    %v24 = vperm.slane %v15, 1
    %v25 = vmul.f32 %v24, %v21
    %v26 = vperm.slane %v15, 2
    %v27 = vmul.f32 %v26, %v21
    %v28 = vand.u32 2147483647, %v23
    %vm29 = vcmp.le.f32.partialorder %v28, 0.7853982
    %vm30 = vcmp.lt.s32.totalorder %v23, 0
    %v31 = vand.u32 %v23, 2139095040
    %v32 = vshrl.u32 %v31, 23
    %v33 = vsub.s32 %v32, 127
    %v34 = vand.u32 2147483647, %v23
    %v35 = vand.u32 %v34, 8388607
    %v36 = vor.u32 %v35, 8388608
    %v37 = vsub.s32 0, %v36
    %v38 = vadd.s32 %v33, 1
    %vm39 = vcmp.gt.s32.totalorder %v38, 0
    %v40 = vsel %vm39, %v38, 0
    %v41 = vshrl.u32 %v40, 5
    %v42 = vand.u32 %v40, 31
    %v43 = vsub.s32 32, %v42
    %v44 = vshrl.u32 683565275, %v43
    %v45 = vshll.u32 683565275, %v42
    %v46 = vshrl.u32 2475754826, %v43
    %v47 = vor.u32 %v45, %v46
    %v48 = vshll.u32 2475754826, %v42
    %v49 = vshrl.u32 2131351028, %v43
    %v50 = vor.u32 %v48, %v49
    %v51 = vshll.u32 2131351028, %v42
    %v52 = vshrl.u32 2102212464, %v43
    %v53 = vor.u32 %v51, %v52
    %v54 = vshll.u32 2102212464, %v42
    %v55 = vshrl.u32 920167782, %v43
    %v56 = vor.u32 %v54, %v55
    %v57 = vshll.u32 920167782, %v42
    %v58 = vshrl.u32 1326507024, %v43
    %v59 = vor.u32 %v57, %v58
    %vm60 = vcmp.lt.s32.totalorder %v41, 1
    %vm61 = vcmp.lt.s32.totalorder %v41, 2
    %vm62 = vcmp.lt.s32.totalorder %v41, 3
    %vm63 = vcmp.lt.s32.totalorder %v41, 4
    %v64 = vsel %vm60, %v44, %v47
    %v65 = vsel %vm63, %v53, 2102212464
    %v66 = vsel %vm62, %v50, %v65
    %v67 = vsel %vm61, %v64, %v66
    %v68 = vsel %vm60, %v47, %v50
    %v69 = vsel %vm63, %v56, 920167782
    %v70 = vsel %vm62, %v53, %v69
    %v71 = vsel %vm61, %v68, %v70
    %v72 = vsel %vm60, %v50, %v53
    %v73 = vsel %vm63, %v59, 1326507024
    %v74 = vsel %vm62, %v56, %v73
    %v75 = vsel %vm61, %v72, %v74
    %v76 = vshll.u32 %v36, 8
    %v77 = vand.u32 %v76, 65535
    %v78 = vshrl.u32 %v76, 16
    %v79 = vand.u32 %v75, 65535
    %v80 = vshrl.u32 %v75, 16
    %v81 = vmul.u32 %v77, %v79
    %v82 = vmul.u32 %v77, %v80
    %v83 = vmul.u32 %v78, %v79
    %v84 = vmul.u32 %v78, %v80
    %v85 = vshll.u32 %v82, 16
    %v86 = vshrl.u32 %v82, 16
    %v87 = vshll.u32 %v83, 16
    %v88 = vshrl.u32 %v83, 16
    %vm89 = vc.u32 %v81, %v85
    %v90 = vsel %vm89, 1, 0
    %v91 = vadd.s32 %v81, %v85
    %v92 = vadd.s32 %v84, %v90
    %vm93 = vc.u32 %v91, %v87
    %v94 = vsel %vm93, 1, 0
    %v95 = vadd.s32 %v91, %v87
    %v96 = vadd.s32 %v92, %v94
    %v97 = vadd.s32 %v96, %v86
    %v98 = vadd.s32 %v97, %v88
    %v99 = vand.u32 %v76, 65535
    %v100 = vshrl.u32 %v76, 16
    %v101 = vand.u32 %v71, 65535
    %v102 = vshrl.u32 %v71, 16
    %v103 = vmul.u32 %v99, %v101
    %v104 = vmul.u32 %v99, %v102
    %v105 = vmul.u32 %v100, %v101
    %v106 = vmul.u32 %v100, %v102
    %v107 = vshll.u32 %v104, 16
    %v108 = vshrl.u32 %v104, 16
    %v109 = vshll.u32 %v105, 16
    %v110 = vshrl.u32 %v105, 16
    %vm111 = vc.u32 %v103, %v107
    %v112 = vsel %vm111, 1, 0
    %v113 = vadd.s32 %v103, %v107
    %v114 = vadd.s32 %v106, %v112
    %vm115 = vc.u32 %v113, %v109
    %v116 = vsel %vm115, 1, 0
    %v117 = vadd.s32 %v113, %v109
    %v118 = vadd.s32 %v114, %v116
    %v119 = vadd.s32 %v118, %v108
    %v120 = vadd.s32 %v119, %v110
    %v121 = vmul.u32 %v76, %v67
    %v122 = vadd.s32 %v98, %v117
    %vm123 = vc.u32 %v98, %v117
    %v124 = vadd.s32 %v120, 1
    %v125 = vsel %vm123, %v124, %v120
    %v126 = vadd.s32 %v121, %v125
    %v127 = vadd.s32 %v126, 536870912
    %v128 = vshrl.u32 %v127, 30
    %v129 = vshll.u32 %v128, 30
    %v130 = vsub.s32 %v126, %v129
    %vm131 = vcmp.lt.s32.totalorder %v130, 0
    %v132 = vsub.s32 0, %v130
    %v133 = vsel %vm131, %v132, %v130
    %v134 = vclz %v133
    %v135 = vsub.s32 %v134, 2
    %vm136 = vcmp.gt.s32.totalorder 0, %v135
    %v137 = vsel %vm136, 0, %v135
    %v138 = vsub.s32 32, %v137
    %v139 = vshll.u32 %v130, %v137
    %v140 = vshrl.u32 %v122, %v138
    %v141 = vor.u32 %v139, %v140
    %v142 = vsub.s32 4294967266, %v137
    %v143 = vadd.s32 %v142, 127
    %v144 = vshll.u32 %v143, 23
    %v145 = vor.u32 4788187, %v144
    %v146 = vand.u32 2147483647, %v145
    %v148 = vcvt.s32.f32 %v141
    %v149 = vmul.f32 %v148, %v146
    %v150 = vxor.u32 %v149, 2147483648
    %v151 = vsel %vm30, %v150, %v149
    %v152 = vsub.s32 4, %v128
    %v153 = vsel %vm30, %v152, %v128
    %v154 = vsel %vm29, %v23, %v151
    %v155 = vsel %vm29, 0, %v153
    %v156 = vmul.f32 %v154, %v154
    %v157 = vmul.f32 %v156, -0.001358992
    %v158 = vadd.f32 %v157, 0.041655596
    %v159 = vmul.f32 %v156, %v158
    %v160 = vadd.f32 %v159, -0.4999988
    %v161 = vmul.f32 %v156, %v160
    %v162 = vadd.f32 1.0, %v161
    %v163 = vmul.f32 %v154, %v154
    %v164 = vmul.f32 %v163, -0.00019511016
    %v165 = vadd.f32 %v164, 0.008332121
    %v166 = vmul.f32 %v163, %v165
    %v167 = vadd.f32 %v166, -0.16666654
    %v168 = vmul.f32 %v163, %v167
    %v169 = vadd.f32 %v168, 1.0
    %v170 = vmul.f32 %v169, %v154
    %vm171 = vweird.f32 %v23
    %v172 = vadd.s32 %v155, 3
    %v173 = vand.u32 %v172, 3
    %vm174 = vcmp.lt.s32.totalorder %v173, 2
    %vm175 = vcmp.eq.s32.totalorder %v173, 0
    %v176 = vxor.u32 %v170, 2147483648
    %v177 = vsel %vm175, %v162, %v176
    %vm178 = vcmp.eq.s32.totalorder %v173, 2
    %v179 = vxor.u32 %v162, 2147483648
    %v180 = vsel %vm178, %v179, %v170
    %v181 = vsel %vm174, %v177, %v180
    %v182 = vsel %vm171, nan, %v181
    %v183 = vand.u32 2147483647, %v25
    %vm184 = vcmp.le.f32.partialorder %v183, 0.7853982
    %vm185 = vcmp.lt.s32.totalorder %v25, 0
    %v186 = vand.u32 %v25, 2139095040
    %v187 = vshrl.u32 %v186, 23
    %v188 = vsub.s32 %v187, 127
    %v189 = vand.u32 2147483647, %v25
    %v190 = vand.u32 %v189, 8388607
    %v191 = vor.u32 %v190, 8388608
    %v192 = vsub.s32 0, %v191
    %v193 = vadd.s32 %v188, 1
    %vm194 = vcmp.gt.s32.totalorder %v193, 0
    %v195 = vsel %vm194, %v193, 0
    %v196 = vshrl.u32 %v195, 5
    %v197 = vand.u32 %v195, 31
    %v198 = vsub.s32 32, %v197
    %v199 = vshrl.u32 683565275, %v198
    %v200 = vshll.u32 683565275, %v197
    %v201 = vshrl.u32 2475754826, %v198
    %v202 = vor.u32 %v200, %v201
    %v203 = vshll.u32 2475754826, %v197
    %v204 = vshrl.u32 2131351028, %v198
    %v205 = vor.u32 %v203, %v204
    %v206 = vshll.u32 2131351028, %v197
    %v207 = vshrl.u32 2102212464, %v198
    %v208 = vor.u32 %v206, %v207
    %v209 = vshll.u32 2102212464, %v197
    %v210 = vshrl.u32 920167782, %v198
    %v211 = vor.u32 %v209, %v210
    %v212 = vshll.u32 920167782, %v197
    %v213 = vshrl.u32 1326507024, %v198
    %v214 = vor.u32 %v212, %v213
    %vm215 = vcmp.lt.s32.totalorder %v196, 1
    %vm216 = vcmp.lt.s32.totalorder %v196, 2
    %vm217 = vcmp.lt.s32.totalorder %v196, 3
    %vm218 = vcmp.lt.s32.totalorder %v196, 4
    %v219 = vsel %vm215, %v199, %v202
    %v220 = vsel %vm218, %v208, 2102212464
    %v221 = vsel %vm217, %v205, %v220
    %v222 = vsel %vm216, %v219, %v221
    %v223 = vsel %vm215, %v202, %v205
    %v224 = vsel %vm218, %v211, 920167782
    %v225 = vsel %vm217, %v208, %v224
    %v226 = vsel %vm216, %v223, %v225
    %v227 = vsel %vm215, %v205, %v208
    %v228 = vsel %vm218, %v214, 1326507024
    %v229 = vsel %vm217, %v211, %v228
    %v230 = vsel %vm216, %v227, %v229
    %v231 = vshll.u32 %v191, 8
    %v232 = vand.u32 %v231, 65535
    %v233 = vshrl.u32 %v231, 16
    %v234 = vand.u32 %v230, 65535
    %v235 = vshrl.u32 %v230, 16
    %v236 = vmul.u32 %v232, %v234
    %v237 = vmul.u32 %v232, %v235
    %v238 = vmul.u32 %v233, %v234
    %v239 = vmul.u32 %v233, %v235
    %v240 = vshll.u32 %v237, 16
    %v241 = vshrl.u32 %v237, 16
    %v242 = vshll.u32 %v238, 16
    %v243 = vshrl.u32 %v238, 16
    %vm244 = vc.u32 %v236, %v240
    %v245 = vsel %vm244, 1, 0
    %v246 = vadd.s32 %v236, %v240
    %v247 = vadd.s32 %v239, %v245
    %vm248 = vc.u32 %v246, %v242
    %v249 = vsel %vm248, 1, 0
    %v250 = vadd.s32 %v246, %v242
    %v251 = vadd.s32 %v247, %v249
    %v252 = vadd.s32 %v251, %v241
    %v253 = vadd.s32 %v252, %v243
    %v254 = vand.u32 %v231, 65535
    %v255 = vshrl.u32 %v231, 16
    %v256 = vand.u32 %v226, 65535
    %v257 = vshrl.u32 %v226, 16
    %v258 = vmul.u32 %v254, %v256
    %v259 = vmul.u32 %v254, %v257
    %v260 = vmul.u32 %v255, %v256
    %v261 = vmul.u32 %v255, %v257
    %v262 = vshll.u32 %v259, 16
    %v263 = vshrl.u32 %v259, 16
    %v264 = vshll.u32 %v260, 16
    %v265 = vshrl.u32 %v260, 16
    %vm266 = vc.u32 %v258, %v262
    %v267 = vsel %vm266, 1, 0
    %v268 = vadd.s32 %v258, %v262
    %v269 = vadd.s32 %v261, %v267
    %vm270 = vc.u32 %v268, %v264
    %v271 = vsel %vm270, 1, 0
    %v272 = vadd.s32 %v268, %v264
    %v273 = vadd.s32 %v269, %v271
    %v274 = vadd.s32 %v273, %v263
    %v275 = vadd.s32 %v274, %v265
    %v276 = vmul.u32 %v231, %v222
    %v277 = vadd.s32 %v253, %v272
    %vm278 = vc.u32 %v253, %v272
    %v279 = vadd.s32 %v275, 1
    %v280 = vsel %vm278, %v279, %v275
    %v281 = vadd.s32 %v276, %v280
    %v282 = vadd.s32 %v281, 536870912
    %v283 = vshrl.u32 %v282, 30
    %v284 = vshll.u32 %v283, 30
    %v285 = vsub.s32 %v281, %v284
    %vm286 = vcmp.lt.s32.totalorder %v285, 0
    %v287 = vsub.s32 0, %v285
    %v288 = vsel %vm286, %v287, %v285
    %v289 = vclz %v288
    %v290 = vsub.s32 %v289, 2
    %vm291 = vcmp.gt.s32.totalorder 0, %v290
    %v292 = vsel %vm291, 0, %v290
    %v293 = vsub.s32 32, %v292
    %v294 = vshll.u32 %v285, %v292
    %v295 = vshrl.u32 %v277, %v293
    %v296 = vor.u32 %v294, %v295
    %v297 = vsub.s32 4294967266, %v292
    %v298 = vadd.s32 %v297, 127
    %v299 = vshll.u32 %v298, 23
    %v300 = vor.u32 4788187, %v299
    %v301 = vand.u32 2147483647, %v300
    %v303 = vcvt.s32.f32 %v296
    %v304 = vmul.f32 %v303, %v301
    %v305 = vxor.u32 %v304, 2147483648
    %v306 = vsel %vm185, %v305, %v304
    %v307 = vsub.s32 4, %v283
    %v308 = vsel %vm185, %v307, %v283
    %v309 = vsel %vm184, %v25, %v306
    %v310 = vsel %vm184, 0, %v308
    %v311 = vmul.f32 %v309, %v309
    %v312 = vmul.f32 %v311, -0.001358992
    %v313 = vadd.f32 %v312, 0.041655596
    %v314 = vmul.f32 %v311, %v313
    %v315 = vadd.f32 %v314, -0.4999988
    %v316 = vmul.f32 %v311, %v315
    %v317 = vadd.f32 1.0, %v316
    %v318 = vmul.f32 %v309, %v309
    %v319 = vmul.f32 %v318, -0.00019511016
    %v320 = vadd.f32 %v319, 0.008332121
    %v321 = vmul.f32 %v318, %v320
    %v322 = vadd.f32 %v321, -0.16666654
    %v323 = vmul.f32 %v318, %v322
    %v324 = vadd.f32 %v323, 1.0
    %v325 = vmul.f32 %v324, %v309
    %vm326 = vweird.f32 %v25
    %v327 = vadd.s32 %v310, 3
    %v328 = vand.u32 %v327, 3
    %vm329 = vcmp.lt.s32.totalorder %v328, 2
    %vm330 = vcmp.eq.s32.totalorder %v328, 0
    %v331 = vxor.u32 %v325, 2147483648
    %v332 = vsel %vm330, %v317, %v331
    %vm333 = vcmp.eq.s32.totalorder %v328, 2
    %v334 = vxor.u32 %v317, 2147483648
    %v335 = vsel %vm333, %v334, %v325
    %v336 = vsel %vm329, %v332, %v335
    %v337 = vsel %vm326, nan, %v336
    %v338 = vand.u32 2147483647, %v27
    %vm339 = vcmp.le.f32.partialorder %v338, 0.7853982
    %vm340 = vcmp.lt.s32.totalorder %v27, 0
    %v341 = vand.u32 %v27, 2139095040
    %v342 = vshrl.u32 %v341, 23
    %v343 = vsub.s32 %v342, 127
    %v344 = vand.u32 2147483647, %v27
    %v345 = vand.u32 %v344, 8388607
    %v346 = vor.u32 %v345, 8388608
    %v347 = vsub.s32 0, %v346
    %v348 = vadd.s32 %v343, 1
    %vm349 = vcmp.gt.s32.totalorder %v348, 0
    %v350 = vsel %vm349, %v348, 0
    %v351 = vshrl.u32 %v350, 5
    %v352 = vand.u32 %v350, 31
    %v353 = vsub.s32 32, %v352
    %v354 = vshrl.u32 683565275, %v353
    %v355 = vshll.u32 683565275, %v352
    %v356 = vshrl.u32 2475754826, %v353
    %v357 = vor.u32 %v355, %v356
    %v358 = vshll.u32 2475754826, %v352
    %v359 = vshrl.u32 2131351028, %v353
    %v360 = vor.u32 %v358, %v359
    %v361 = vshll.u32 2131351028, %v352
    %v362 = vshrl.u32 2102212464, %v353
    %v363 = vor.u32 %v361, %v362
    %v364 = vshll.u32 2102212464, %v352
    %v365 = vshrl.u32 920167782, %v353
    %v366 = vor.u32 %v364, %v365
    %v367 = vshll.u32 920167782, %v352
    %v368 = vshrl.u32 1326507024, %v353
    %v369 = vor.u32 %v367, %v368
    %vm370 = vcmp.lt.s32.totalorder %v351, 1
    %vm371 = vcmp.lt.s32.totalorder %v351, 2
    %vm372 = vcmp.lt.s32.totalorder %v351, 3
    %vm373 = vcmp.lt.s32.totalorder %v351, 4
    %v374 = vsel %vm370, %v354, %v357
    %v375 = vsel %vm373, %v363, 2102212464
    %v376 = vsel %vm372, %v360, %v375
    %v377 = vsel %vm371, %v374, %v376
    %v378 = vsel %vm370, %v357, %v360
    %v379 = vsel %vm373, %v366, 920167782
    %v380 = vsel %vm372, %v363, %v379
    %v381 = vsel %vm371, %v378, %v380
    %v382 = vsel %vm370, %v360, %v363
    %v383 = vsel %vm373, %v369, 1326507024
    %v384 = vsel %vm372, %v366, %v383
    %v385 = vsel %vm371, %v382, %v384
    %v386 = vshll.u32 %v346, 8
    %v387 = vand.u32 %v386, 65535
    %v388 = vshrl.u32 %v386, 16
    %v389 = vand.u32 %v385, 65535
    %v390 = vshrl.u32 %v385, 16
    %v391 = vmul.u32 %v387, %v389
    %v392 = vmul.u32 %v387, %v390
    %v393 = vmul.u32 %v388, %v389
    %v394 = vmul.u32 %v388, %v390
    %v395 = vshll.u32 %v392, 16
    %v396 = vshrl.u32 %v392, 16
    %v397 = vshll.u32 %v393, 16
    %v398 = vshrl.u32 %v393, 16
    %vm399 = vc.u32 %v391, %v395
    %v400 = vsel %vm399, 1, 0
    %v401 = vadd.s32 %v391, %v395
    %v402 = vadd.s32 %v394, %v400
    %vm403 = vc.u32 %v401, %v397
    %v404 = vsel %vm403, 1, 0
    %v405 = vadd.s32 %v401, %v397
    %v406 = vadd.s32 %v402, %v404
    %v407 = vadd.s32 %v406, %v396
    %v408 = vadd.s32 %v407, %v398
    %v409 = vand.u32 %v386, 65535
    %v410 = vshrl.u32 %v386, 16
    %v411 = vand.u32 %v381, 65535
    %v412 = vshrl.u32 %v381, 16
    %v413 = vmul.u32 %v409, %v411
    %v414 = vmul.u32 %v409, %v412
    %v415 = vmul.u32 %v410, %v411
    %v416 = vmul.u32 %v410, %v412
    %v417 = vshll.u32 %v414, 16
    %v418 = vshrl.u32 %v414, 16
    %v419 = vshll.u32 %v415, 16
    %v420 = vshrl.u32 %v415, 16
    %vm421 = vc.u32 %v413, %v417
    %v422 = vsel %vm421, 1, 0
    %v423 = vadd.s32 %v413, %v417
    %v424 = vadd.s32 %v416, %v422
    %vm425 = vc.u32 %v423, %v419
    %v426 = vsel %vm425, 1, 0
    %v427 = vadd.s32 %v423, %v419
    %v428 = vadd.s32 %v424, %v426
    %v429 = vadd.s32 %v428, %v418
    %v430 = vadd.s32 %v429, %v420
    %v431 = vmul.u32 %v386, %v377
    %v432 = vadd.s32 %v408, %v427
    %vm433 = vc.u32 %v408, %v427
    %v434 = vadd.s32 %v430, 1
    %v435 = vsel %vm433, %v434, %v430
    %v436 = vadd.s32 %v431, %v435
    %v437 = vadd.s32 %v436, 536870912
    %v438 = vshrl.u32 %v437, 30
    %v439 = vshll.u32 %v438, 30
    %v440 = vsub.s32 %v436, %v439
    %vm441 = vcmp.lt.s32.totalorder %v440, 0
    %v442 = vsub.s32 0, %v440
    %v443 = vsel %vm441, %v442, %v440
    %v444 = vclz %v443
    %v445 = vsub.s32 %v444, 2
    %vm446 = vcmp.gt.s32.totalorder 0, %v445
    %v447 = vsel %vm446, 0, %v445
    %v448 = vsub.s32 32, %v447
    %v449 = vshll.u32 %v440, %v447
    %v450 = vshrl.u32 %v432, %v448
    %v451 = vor.u32 %v449, %v450
    %v452 = vsub.s32 4294967266, %v447
    %v453 = vadd.s32 %v452, 127
    %v454 = vshll.u32 %v453, 23
    %v455 = vor.u32 4788187, %v454
    %v456 = vand.u32 2147483647, %v455
    %v458 = vcvt.s32.f32 %v451
    %v459 = vmul.f32 %v458, %v456
    %v460 = vxor.u32 %v459, 2147483648
    %v461 = vsel %vm340, %v460, %v459
    %v462 = vsub.s32 4, %v438
    %v463 = vsel %vm340, %v462, %v438
    %v464 = vsel %vm339, %v27, %v461
    %v465 = vsel %vm339, 0, %v463
    %v466 = vmul.f32 %v464, %v464
    %v467 = vmul.f32 %v466, -0.001358992
    %v468 = vadd.f32 %v467, 0.041655596
    %v469 = vmul.f32 %v466, %v468
    %v470 = vadd.f32 %v469, -0.4999988
    %v471 = vmul.f32 %v466, %v470
    %v472 = vadd.f32 1.0, %v471
    %v473 = vmul.f32 %v464, %v464
    %v474 = vmul.f32 %v473, -0.00019511016
    %v475 = vadd.f32 %v474, 0.008332121
    %v476 = vmul.f32 %v473, %v475
    %v477 = vadd.f32 %v476, -0.16666654
    %v478 = vmul.f32 %v473, %v477
    %v479 = vadd.f32 %v478, 1.0
    %v480 = vmul.f32 %v479, %v464
    %vm481 = vweird.f32 %v27
    %v482 = vadd.s32 %v465, 3
    %v483 = vand.u32 %v482, 3
    %vm484 = vcmp.lt.s32.totalorder %v483, 2
    %vm485 = vcmp.eq.s32.totalorder %v483, 0
    %v486 = vxor.u32 %v480, 2147483648
    %v487 = vsel %vm485, %v472, %v486
    %vm488 = vcmp.eq.s32.totalorder %v483, 2
    %v489 = vxor.u32 %v472, 2147483648
    %v490 = vsel %vm488, %v489, %v480
    %v491 = vsel %vm484, %v487, %v490
    %v492 = vsel %vm481, nan, %v491
    %v493 = vand.u32 2147483647, %v23
    %vm494 = vcmp.le.f32.partialorder %v493, 0.7853982
    %vm495 = vcmp.lt.s32.totalorder %v23, 0
    %v496 = vand.u32 %v23, 2139095040
    %v497 = vshrl.u32 %v496, 23
    %v498 = vsub.s32 %v497, 127
    %v499 = vand.u32 2147483647, %v23
    %v500 = vand.u32 %v499, 8388607
    %v501 = vor.u32 %v500, 8388608
    %v502 = vsub.s32 0, %v501
    %v503 = vadd.s32 %v498, 1
    %vm504 = vcmp.gt.s32.totalorder %v503, 0
    %v505 = vsel %vm504, %v503, 0
    %v506 = vshrl.u32 %v505, 5
    %v507 = vand.u32 %v505, 31
    %v508 = vsub.s32 32, %v507
    %v509 = vshrl.u32 683565275, %v508
    %v510 = vshll.u32 683565275, %v507
    %v511 = vshrl.u32 2475754826, %v508
    %v512 = vor.u32 %v510, %v511
    %v513 = vshll.u32 2475754826, %v507
    %v514 = vshrl.u32 2131351028, %v508
    %v515 = vor.u32 %v513, %v514
    %v516 = vshll.u32 2131351028, %v507
    %v517 = vshrl.u32 2102212464, %v508
    %v518 = vor.u32 %v516, %v517
    %v519 = vshll.u32 2102212464, %v507
    %v520 = vshrl.u32 920167782, %v508
    %v521 = vor.u32 %v519, %v520
    %v522 = vshll.u32 920167782, %v507
    %v523 = vshrl.u32 1326507024, %v508
    %v524 = vor.u32 %v522, %v523
    %vm525 = vcmp.lt.s32.totalorder %v506, 1
    %vm526 = vcmp.lt.s32.totalorder %v506, 2
    %vm527 = vcmp.lt.s32.totalorder %v506, 3
    %vm528 = vcmp.lt.s32.totalorder %v506, 4
    %v529 = vsel %vm525, %v509, %v512
    %v530 = vsel %vm528, %v518, 2102212464
    %v531 = vsel %vm527, %v515, %v530
    %v532 = vsel %vm526, %v529, %v531
    %v533 = vsel %vm525, %v512, %v515
    %v534 = vsel %vm528, %v521, 920167782
    %v535 = vsel %vm527, %v518, %v534
    %v536 = vsel %vm526, %v533, %v535
    %v537 = vsel %vm525, %v515, %v518
    %v538 = vsel %vm528, %v524, 1326507024
    %v539 = vsel %vm527, %v521, %v538
    %v540 = vsel %vm526, %v537, %v539
    %v541 = vshll.u32 %v501, 8
    %v542 = vand.u32 %v541, 65535
    %v543 = vshrl.u32 %v541, 16
    %v544 = vand.u32 %v540, 65535
    %v545 = vshrl.u32 %v540, 16
    %v546 = vmul.u32 %v542, %v544
    %v547 = vmul.u32 %v542, %v545
    %v548 = vmul.u32 %v543, %v544
    %v549 = vmul.u32 %v543, %v545
    %v550 = vshll.u32 %v547, 16
    %v551 = vshrl.u32 %v547, 16
    %v552 = vshll.u32 %v548, 16
    %v553 = vshrl.u32 %v548, 16
    %vm554 = vc.u32 %v546, %v550
    %v555 = vsel %vm554, 1, 0
    %v556 = vadd.s32 %v546, %v550
    %v557 = vadd.s32 %v549, %v555
    %vm558 = vc.u32 %v556, %v552
    %v559 = vsel %vm558, 1, 0
    %v560 = vadd.s32 %v556, %v552
    %v561 = vadd.s32 %v557, %v559
    %v562 = vadd.s32 %v561, %v551
    %v563 = vadd.s32 %v562, %v553
    %v564 = vand.u32 %v541, 65535
    %v565 = vshrl.u32 %v541, 16
    %v566 = vand.u32 %v536, 65535
    %v567 = vshrl.u32 %v536, 16
    %v568 = vmul.u32 %v564, %v566
    %v569 = vmul.u32 %v564, %v567
    %v570 = vmul.u32 %v565, %v566
    %v571 = vmul.u32 %v565, %v567
    %v572 = vshll.u32 %v569, 16
    %v573 = vshrl.u32 %v569, 16
    %v574 = vshll.u32 %v570, 16
    %v575 = vshrl.u32 %v570, 16
    %vm576 = vc.u32 %v568, %v572
    %v577 = vsel %vm576, 1, 0
    %v578 = vadd.s32 %v568, %v572
    %v579 = vadd.s32 %v571, %v577
    %vm580 = vc.u32 %v578, %v574
    %v581 = vsel %vm580, 1, 0
    %v582 = vadd.s32 %v578, %v574
    %v583 = vadd.s32 %v579, %v581
    %v584 = vadd.s32 %v583, %v573
    %v585 = vadd.s32 %v584, %v575
    %v586 = vmul.u32 %v541, %v532
    %v587 = vadd.s32 %v563, %v582
    %vm588 = vc.u32 %v563, %v582
    %v589 = vadd.s32 %v585, 1
    %v590 = vsel %vm588, %v589, %v585
    %v591 = vadd.s32 %v586, %v590
    %v592 = vadd.s32 %v591, 536870912
    %v593 = vshrl.u32 %v592, 30
    %v594 = vshll.u32 %v593, 30
    %v595 = vsub.s32 %v591, %v594
    %vm596 = vcmp.lt.s32.totalorder %v595, 0
    %v597 = vsub.s32 0, %v595
    %v598 = vsel %vm596, %v597, %v595
    %v599 = vclz %v598
    %v600 = vsub.s32 %v599, 2
    %vm601 = vcmp.gt.s32.totalorder 0, %v600
    %v602 = vsel %vm601, 0, %v600
    %v603 = vsub.s32 32, %v602
    %v604 = vshll.u32 %v595, %v602
    %v605 = vshrl.u32 %v587, %v603
    %v606 = vor.u32 %v604, %v605
    %v607 = vsub.s32 4294967266, %v602
    %v608 = vadd.s32 %v607, 127
    %v609 = vshll.u32 %v608, 23
    %v610 = vor.u32 4788187, %v609
    %v611 = vand.u32 2147483647, %v610
    %v613 = vcvt.s32.f32 %v606
    %v614 = vmul.f32 %v613, %v611
    %v615 = vxor.u32 %v614, 2147483648
    %v616 = vsel %vm495, %v615, %v614
    %v617 = vsub.s32 4, %v593
    %v618 = vsel %vm495, %v617, %v593
    %v619 = vsel %vm494, %v23, %v616
    %v620 = vsel %vm494, 0, %v618
    %v621 = vmul.f32 %v619, %v619
    %v622 = vmul.f32 %v621, -0.001358992
    %v623 = vadd.f32 %v622, 0.041655596
    %v624 = vmul.f32 %v621, %v623
    %v625 = vadd.f32 %v624, -0.4999988
    %v626 = vmul.f32 %v621, %v625
    %v627 = vadd.f32 1.0, %v626
    %v628 = vmul.f32 %v619, %v619
    %v629 = vmul.f32 %v628, -0.00019511016
    %v630 = vadd.f32 %v629, 0.008332121
    %v631 = vmul.f32 %v628, %v630
    %v632 = vadd.f32 %v631, -0.16666654
    %v633 = vmul.f32 %v628, %v632
    %v634 = vadd.f32 %v633, 1.0
    %v635 = vmul.f32 %v634, %v619
    %vm636 = vweird.f32 %v23
    %v637 = vand.u32 %v620, 3
    %vm638 = vcmp.lt.s32.totalorder %v637, 2
    %vm639 = vcmp.eq.s32.totalorder %v637, 0
    %v640 = vxor.u32 %v635, 2147483648
    %v641 = vsel %vm639, %v627, %v640
    %vm642 = vcmp.eq.s32.totalorder %v637, 2
    %v643 = vxor.u32 %v627, 2147483648
    %v644 = vsel %vm642, %v643, %v635
    %v645 = vsel %vm638, %v641, %v644
    %v646 = vsel %vm636, nan, %v645
    %v647 = vand.u32 2147483647, %v25
    %vm648 = vcmp.le.f32.partialorder %v647, 0.7853982
    %vm649 = vcmp.lt.s32.totalorder %v25, 0
    %v650 = vand.u32 %v25, 2139095040
    %v651 = vshrl.u32 %v650, 23
    %v652 = vsub.s32 %v651, 127
    %v653 = vand.u32 2147483647, %v25
    %v654 = vand.u32 %v653, 8388607
    %v655 = vor.u32 %v654, 8388608
    %v656 = vsub.s32 0, %v655
    %v657 = vadd.s32 %v652, 1
    %vm658 = vcmp.gt.s32.totalorder %v657, 0
    %v659 = vsel %vm658, %v657, 0
    %v660 = vshrl.u32 %v659, 5
    %v661 = vand.u32 %v659, 31
    %v662 = vsub.s32 32, %v661
    %v663 = vshrl.u32 683565275, %v662
    %v664 = vshll.u32 683565275, %v661
    %v665 = vshrl.u32 2475754826, %v662
    %v666 = vor.u32 %v664, %v665
    %v667 = vshll.u32 2475754826, %v661
    %v668 = vshrl.u32 2131351028, %v662
    %v669 = vor.u32 %v667, %v668
    %v670 = vshll.u32 2131351028, %v661
    %v671 = vshrl.u32 2102212464, %v662
    %v672 = vor.u32 %v670, %v671
    %v673 = vshll.u32 2102212464, %v661
    %v674 = vshrl.u32 920167782, %v662
    %v675 = vor.u32 %v673, %v674
    %v676 = vshll.u32 920167782, %v661
    %v677 = vshrl.u32 1326507024, %v662
    %v678 = vor.u32 %v676, %v677
    %vm679 = vcmp.lt.s32.totalorder %v660, 1
    %vm680 = vcmp.lt.s32.totalorder %v660, 2
    %vm681 = vcmp.lt.s32.totalorder %v660, 3
    %vm682 = vcmp.lt.s32.totalorder %v660, 4
    %v683 = vsel %vm679, %v663, %v666
    %v684 = vsel %vm682, %v672, 2102212464
    %v685 = vsel %vm681, %v669, %v684
    %v686 = vsel %vm680, %v683, %v685
    %v687 = vsel %vm679, %v666, %v669
    %v688 = vsel %vm682, %v675, 920167782
    %v689 = vsel %vm681, %v672, %v688
    %v690 = vsel %vm680, %v687, %v689
    %v691 = vsel %vm679, %v669, %v672
    %v692 = vsel %vm682, %v678, 1326507024
    %v693 = vsel %vm681, %v675, %v692
    %v694 = vsel %vm680, %v691, %v693
    %v695 = vshll.u32 %v655, 8
    %v696 = vand.u32 %v695, 65535
    %v697 = vshrl.u32 %v695, 16
    %v698 = vand.u32 %v694, 65535
    %v699 = vshrl.u32 %v694, 16
    %v700 = vmul.u32 %v696, %v698
    %v701 = vmul.u32 %v696, %v699
    %v702 = vmul.u32 %v697, %v698
    %v703 = vmul.u32 %v697, %v699
    %v704 = vshll.u32 %v701, 16
    %v705 = vshrl.u32 %v701, 16
    %v706 = vshll.u32 %v702, 16
    %v707 = vshrl.u32 %v702, 16
    %vm708 = vc.u32 %v700, %v704
    %v709 = vsel %vm708, 1, 0
    %v710 = vadd.s32 %v700, %v704
    %v711 = vadd.s32 %v703, %v709
    %vm712 = vc.u32 %v710, %v706
    %v713 = vsel %vm712, 1, 0
    %v714 = vadd.s32 %v710, %v706
    %v715 = vadd.s32 %v711, %v713
    %v716 = vadd.s32 %v715, %v705
    %v717 = vadd.s32 %v716, %v707
    %v718 = vand.u32 %v695, 65535
    %v719 = vshrl.u32 %v695, 16
    %v720 = vand.u32 %v690, 65535
    %v721 = vshrl.u32 %v690, 16
    %v722 = vmul.u32 %v718, %v720
    %v723 = vmul.u32 %v718, %v721
    %v724 = vmul.u32 %v719, %v720
    %v725 = vmul.u32 %v719, %v721
    %v726 = vshll.u32 %v723, 16
    %v727 = vshrl.u32 %v723, 16
    %v728 = vshll.u32 %v724, 16
    %v729 = vshrl.u32 %v724, 16
    %vm730 = vc.u32 %v722, %v726
    %v731 = vsel %vm730, 1, 0
    %v732 = vadd.s32 %v722, %v726
    %v733 = vadd.s32 %v725, %v731
    %vm734 = vc.u32 %v732, %v728
    %v735 = vsel %vm734, 1, 0
    %v736 = vadd.s32 %v732, %v728
    %v737 = vadd.s32 %v733, %v735
    %v738 = vadd.s32 %v737, %v727
    %v739 = vadd.s32 %v738, %v729
    %v740 = vmul.u32 %v695, %v686
    %v741 = vadd.s32 %v717, %v736
    %vm742 = vc.u32 %v717, %v736
    %v743 = vadd.s32 %v739, 1
    %v744 = vsel %vm742, %v743, %v739
    %v745 = vadd.s32 %v740, %v744
    %v746 = vadd.s32 %v745, 536870912
    %v747 = vshrl.u32 %v746, 30
    %v748 = vshll.u32 %v747, 30
    %v749 = vsub.s32 %v745, %v748
    %vm750 = vcmp.lt.s32.totalorder %v749, 0
    %v751 = vsub.s32 0, %v749
    %v752 = vsel %vm750, %v751, %v749
    %v753 = vclz %v752
    %v754 = vsub.s32 %v753, 2
    %vm755 = vcmp.gt.s32.totalorder 0, %v754
    %v756 = vsel %vm755, 0, %v754
    %v757 = vsub.s32 32, %v756
    %v758 = vshll.u32 %v749, %v756
    %v759 = vshrl.u32 %v741, %v757
    %v760 = vor.u32 %v758, %v759
    %v761 = vsub.s32 4294967266, %v756
    %v762 = vadd.s32 %v761, 127
    %v763 = vshll.u32 %v762, 23
    %v764 = vor.u32 4788187, %v763
    %v765 = vand.u32 2147483647, %v764
    %v767 = vcvt.s32.f32 %v760
    %v768 = vmul.f32 %v767, %v765
    %v769 = vxor.u32 %v768, 2147483648
    %v770 = vsel %vm649, %v769, %v768
    %v771 = vsub.s32 4, %v747
    %v772 = vsel %vm649, %v771, %v747
    %v773 = vsel %vm648, %v25, %v770
    %v774 = vsel %vm648, 0, %v772
    %v775 = vmul.f32 %v773, %v773
    %v776 = vmul.f32 %v775, -0.001358992
    %v777 = vadd.f32 %v776, 0.041655596
    %v778 = vmul.f32 %v775, %v777
    %v779 = vadd.f32 %v778, -0.4999988
    %v780 = vmul.f32 %v775, %v779
    %v781 = vadd.f32 1.0, %v780
    %v782 = vmul.f32 %v773, %v773
    %v783 = vmul.f32 %v782, -0.00019511016
    %v784 = vadd.f32 %v783, 0.008332121
    %v785 = vmul.f32 %v782, %v784
    %v786 = vadd.f32 %v785, -0.16666654
    %v787 = vmul.f32 %v782, %v786
    %v788 = vadd.f32 %v787, 1.0
    %v789 = vmul.f32 %v788, %v773
    %vm790 = vweird.f32 %v25
    %v791 = vand.u32 %v774, 3
    %vm792 = vcmp.lt.s32.totalorder %v791, 2
    %vm793 = vcmp.eq.s32.totalorder %v791, 0
    %v794 = vxor.u32 %v789, 2147483648
    %v795 = vsel %vm793, %v781, %v794
    %vm796 = vcmp.eq.s32.totalorder %v791, 2
    %v797 = vxor.u32 %v781, 2147483648
    %v798 = vsel %vm796, %v797, %v789
    %v799 = vsel %vm792, %v795, %v798
    %v800 = vsel %vm790, nan, %v799
    %v801 = vand.u32 2147483647, %v27
    %vm802 = vcmp.le.f32.partialorder %v801, 0.7853982
    %vm803 = vcmp.lt.s32.totalorder %v27, 0
    %v804 = vand.u32 %v27, 2139095040
    %v805 = vshrl.u32 %v804, 23
    %v806 = vsub.s32 %v805, 127
    %v807 = vand.u32 2147483647, %v27
    %v808 = vand.u32 %v807, 8388607
    %v809 = vor.u32 %v808, 8388608
    %v810 = vsub.s32 0, %v809
    %v811 = vadd.s32 %v806, 1
    %vm812 = vcmp.gt.s32.totalorder %v811, 0
    %v813 = vsel %vm812, %v811, 0
    %v814 = vshrl.u32 %v813, 5
    %v815 = vand.u32 %v813, 31
    %v816 = vsub.s32 32, %v815
    %v817 = vshrl.u32 683565275, %v816
    %v818 = vshll.u32 683565275, %v815
    %v819 = vshrl.u32 2475754826, %v816
    %v820 = vor.u32 %v818, %v819
    %v821 = vshll.u32 2475754826, %v815
    %v822 = vshrl.u32 2131351028, %v816
    %v823 = vor.u32 %v821, %v822
    %v824 = vshll.u32 2131351028, %v815
    %v825 = vshrl.u32 2102212464, %v816
    %v826 = vor.u32 %v824, %v825
    %v827 = vshll.u32 2102212464, %v815
    %v828 = vshrl.u32 920167782, %v816
    %v829 = vor.u32 %v827, %v828
    %v830 = vshll.u32 920167782, %v815
    %v831 = vshrl.u32 1326507024, %v816
    %v832 = vor.u32 %v830, %v831
    %vm833 = vcmp.lt.s32.totalorder %v814, 1
    %vm834 = vcmp.lt.s32.totalorder %v814, 2
    %vm835 = vcmp.lt.s32.totalorder %v814, 3
    %vm836 = vcmp.lt.s32.totalorder %v814, 4
    %v837 = vsel %vm833, %v817, %v820
    %v838 = vsel %vm836, %v826, 2102212464
    %v839 = vsel %vm835, %v823, %v838
    %v840 = vsel %vm834, %v837, %v839
    %v841 = vsel %vm833, %v820, %v823
    %v842 = vsel %vm836, %v829, 920167782
    %v843 = vsel %vm835, %v826, %v842
    %v844 = vsel %vm834, %v841, %v843
    %v845 = vsel %vm833, %v823, %v826
    %v846 = vsel %vm836, %v832, 1326507024
    %v847 = vsel %vm835, %v829, %v846
    %v848 = vsel %vm834, %v845, %v847
    %v849 = vshll.u32 %v809, 8
    %v850 = vand.u32 %v849, 65535
    %v851 = vshrl.u32 %v849, 16
    %v852 = vand.u32 %v848, 65535
    %v853 = vshrl.u32 %v848, 16
    %v854 = vmul.u32 %v850, %v852
    %v855 = vmul.u32 %v850, %v853
    %v856 = vmul.u32 %v851, %v852
    %v857 = vmul.u32 %v851, %v853
    %v858 = vshll.u32 %v855, 16
    %v859 = vshrl.u32 %v855, 16
    %v860 = vshll.u32 %v856, 16
    %v861 = vshrl.u32 %v856, 16
    %vm862 = vc.u32 %v854, %v858
    %v863 = vsel %vm862, 1, 0
    %v864 = vadd.s32 %v854, %v858
    %v865 = vadd.s32 %v857, %v863
    %vm866 = vc.u32 %v864, %v860
    %v867 = vsel %vm866, 1, 0
    %v868 = vadd.s32 %v864, %v860
    %v869 = vadd.s32 %v865, %v867
    %v870 = vadd.s32 %v869, %v859
    %v871 = vadd.s32 %v870, %v861
    %v872 = vand.u32 %v849, 65535
    %v873 = vshrl.u32 %v849, 16
    %v874 = vand.u32 %v844, 65535
    %v875 = vshrl.u32 %v844, 16
    %v876 = vmul.u32 %v872, %v874
    %v877 = vmul.u32 %v872, %v875
    %v878 = vmul.u32 %v873, %v874
    %v879 = vmul.u32 %v873, %v875
    %v880 = vshll.u32 %v877, 16
    %v881 = vshrl.u32 %v877, 16
    %v882 = vshll.u32 %v878, 16
    %v883 = vshrl.u32 %v878, 16
    %vm884 = vc.u32 %v876, %v880
    %v885 = vsel %vm884, 1, 0
    %v886 = vadd.s32 %v876, %v880
    %v887 = vadd.s32 %v879, %v885
    %vm888 = vc.u32 %v886, %v882
    %v889 = vsel %vm888, 1, 0
    %v890 = vadd.s32 %v886, %v882
    %v891 = vadd.s32 %v887, %v889
    %v892 = vadd.s32 %v891, %v881
    %v893 = vadd.s32 %v892, %v883
    %v894 = vmul.u32 %v849, %v840
    %v895 = vadd.s32 %v871, %v890
    %vm896 = vc.u32 %v871, %v890
    %v897 = vadd.s32 %v893, 1
    %v898 = vsel %vm896, %v897, %v893
    %v899 = vadd.s32 %v894, %v898
    %v900 = vadd.s32 %v899, 536870912
    %v901 = vshrl.u32 %v900, 30
    %v902 = vshll.u32 %v901, 30
    %v903 = vsub.s32 %v899, %v902
    %vm904 = vcmp.lt.s32.totalorder %v903, 0
    %v905 = vsub.s32 0, %v903
    %v906 = vsel %vm904, %v905, %v903
    %v907 = vclz %v906
    %v908 = vsub.s32 %v907, 2
    %vm909 = vcmp.gt.s32.totalorder 0, %v908
    %v910 = vsel %vm909, 0, %v908
    %v911 = vsub.s32 32, %v910
    %v912 = vshll.u32 %v903, %v910
    %v913 = vshrl.u32 %v895, %v911
    %v914 = vor.u32 %v912, %v913
    %v915 = vsub.s32 4294967266, %v910
    %v916 = vadd.s32 %v915, 127
    %v917 = vshll.u32 %v916, 23
    %v918 = vor.u32 4788187, %v917
    %v919 = vand.u32 2147483647, %v918
    %v921 = vcvt.s32.f32 %v914
    %v922 = vmul.f32 %v921, %v919
    %v923 = vxor.u32 %v922, 2147483648
    %v924 = vsel %vm803, %v923, %v922
    %v925 = vsub.s32 4, %v901
    %v926 = vsel %vm803, %v925, %v901
    %v927 = vsel %vm802, %v27, %v924
    %v928 = vsel %vm802, 0, %v926
    %v929 = vmul.f32 %v927, %v927
    %v930 = vmul.f32 %v929, -0.001358992
    %v931 = vadd.f32 %v930, 0.041655596
    %v932 = vmul.f32 %v929, %v931
    %v933 = vadd.f32 %v932, -0.4999988
    %v934 = vmul.f32 %v929, %v933
    %v935 = vadd.f32 1.0, %v934
    %v936 = vmul.f32 %v927, %v927
    %v937 = vmul.f32 %v936, -0.00019511016
    %v938 = vadd.f32 %v937, 0.008332121
    %v939 = vmul.f32 %v936, %v938
    %v940 = vadd.f32 %v939, -0.16666654
    %v941 = vmul.f32 %v936, %v940
    %v942 = vadd.f32 %v941, 1.0
    %v943 = vmul.f32 %v942, %v927
    %vm944 = vweird.f32 %v27
    %v945 = vand.u32 %v928, 3
    %vm946 = vcmp.lt.s32.totalorder %v945, 2
    %vm947 = vcmp.eq.s32.totalorder %v945, 0
    %v948 = vxor.u32 %v943, 2147483648
    %v949 = vsel %vm947, %v935, %v948
    %vm950 = vcmp.eq.s32.totalorder %v945, 2
    %v951 = vxor.u32 %v935, 2147483648
    %v952 = vsel %vm950, %v951, %v943
    %v953 = vsel %vm946, %v949, %v952
    %v954 = vsel %vm944, nan, %v953
    %vm955 = vcmask 1042432
    %v956 = vsel %vm955, %v15, 1.0
    %v957 = vld [vmem:[%s2] sm:$0xff]
    %v958 = vld [vmem:[%s2 + $0x8] sm:$0xff]
    %v959 = vld [vmem:[%s2 + $0x10] sm:$0xff]
    %v960 = vld [vmem:[%s2 + $0x18] sm:$0xff]
    %v961 = vld [vmem:[%s2 + $0x20] sm:$0xff]
    %v962 = vld [vmem:[%s2 + $0x28] sm:$0xff]
    %v963 = vld [vmem:[%s2 + $0x30] sm:$0xf]
    %964 = vxpose.xlu0.b32.start [1/16] %v182, 128
    %965 = vxpose.xlu0.b32.cont [2/16] %v337, 128
    %966 = vxpose.xlu0.b32.cont [3/16] %v492, 128
    %967 = vxpose.xlu0.b32.cont [4/16] %v646, 128
    %968 = vxpose.xlu0.b32.cont [5/16] %v800, 128
    %969 = vxpose.xlu0.b32.cont [6/16] %v954, 128
    %970 = vxpose.xlu0.b32.cont [7/16] %v956, 128
    %971 = vxpose.xlu0.b32.cont [8/16] 0.0, 128
    %972 = vxpose.xlu0.b32.cont [9/16] 0.0, 128
    %973 = vxpose.xlu0.b32.cont [10/16] 0.0, 128
    %974 = vxpose.xlu0.b32.cont [11/16] 0.0, 128
    %975 = vxpose.xlu0.b32.cont [12/16] 0.0, 128
    %976 = vxpose.xlu0.b32.cont [13/16] 0.0, 128
    %977 = vxpose.xlu0.b32.cont [14/16] 0.0, 128
    %978 = vxpose.xlu0.b32.cont [15/16] 0.0, 128
    %979 = vxpose.xlu0.b32.end [16/16] 0.0, 128
    %v980 = vpop.trf.xlu0
    %v981 = vpop.trf.xlu0
    %v982 = vpop.trf.xlu0
    %v983 = vpop.trf.xlu0
    %v984 = vpop.trf.xlu0
    %v985 = vpop.trf.xlu0
    %v986 = vpop.trf.xlu0
    %v987 = vpop.trf.xlu0
    %v988 = vpop.trf.xlu0
    %v989 = vpop.trf.xlu0
    %v990 = vpop.trf.xlu0
    %v991 = vpop.trf.xlu0
    %v992 = vpop.trf.xlu0
    %v993 = vpop.trf.xlu0
    %v994 = vpop.trf.xlu0
    %v995 = vpop.trf.xlu0
    %vm996 = vcmask 424960
    %v998 = vsel %vm996, %v980, 0
    %v1001 = vsel %vm996, %v981, 0
    %vm1003 = vcmask 1043456
    %v1005 = vsel %vm1003, %v963, 0
    %1007 = vmatpush.msra.mxu0 0.0
    %1008 = vmatpush.msra.mxu0 0.0
    %1009 = vmatpush.msra.mxu0 0.0
    %1010 = vmatpush.msra.mxu0 0.0
    %1011 = vmatpush.msra.mxu0 0.0
    %1012 = vmatpush.msra.mxu0 0.0
    %1013 = vmatpush.msra.mxu0 0.0
    %1014 = vmatpush.msra.mxu0 0.0
    %1015 = vmatpush.msra.mxu0 0.0
    %1016 = vmatpush.msra.mxu0 %v1005
    %1017 = vmatpush.msra.mxu0 %v962
    %1018 = vmatpush.msra.mxu0 %v961
    %1019 = vmatpush.msra.mxu0 %v960
    %1020 = vmatpush.msra.mxu0 %v959
    %1021 = vmatpush.msra.mxu0 %v958
    %1022 = vmatpush.msra.mxu0 %v957
    %1023 = vmatmul.f32.gmra.mxu0 %v998
    %v1024 = vpop.f32.mrf.mxu0
    %v1025 = vadd.f32 0.0, %v1024
    %1026 = vmatmul.f32.gmra.mxu0 %v1001
    %v1027 = vpop.f32.mrf.mxu0
    %v1028 = vadd.f32 0.0, %v1027
    %1029 = vdwg.mxu0
    %vm1030 = vcmask 261120
    %1031 = vst.msk [vmem:[#allocation2] sm:$0xff] %vm1030, %v1025
    %1032 = vst.msk [vmem:[#allocation2 + $0x8] sm:$0xff] %vm1030, %v1028
    // Predicated region
    $region14: #{fourier_point_encoder.1} parent=1 // pred_check
      _
    $region15: #{fourier_point_encoder.1} parent=1 // pred_check_branch
      %1034 = sbr.rel (0) target = $region17
    $region16: #{fourier_point_encoder.1} parent=1 // pred_region
      %1036 = vsyncadd [#allocation3], 0
      %s1037 = sshll.u32 [#allocation2], 4
      %s1038 = int_to_ptr.vmem [resolvable:$true] %s1037
      %s1039 = sshll.u32 %s3, 4
      %s1040 = int_to_ptr.hbm [resolvable:$true] %s1039
      %1045 = dma.vmem_to_hbm [thread:$0]  %s1038, 256, %s1040, [#allocation3], 128, 128, 8
    $region17: #{fourier_point_encoder.1} parent=1 // pred_fallthru
      _
    // Predicated region
    $region18: #{fourier_point_encoder.1} parent=1 // pred_check
      _
    $region19: #{fourier_point_encoder.1} parent=1 // pred_check_branch
      %1047 = sbr.rel (0) target = $region21
    $region20: #{fourier_point_encoder.1} parent=1 // pred_region
      %1049 = dma.done [#allocation3], 256
    $region21: #{fourier_point_encoder.1} parent=1 // pred_fallthru
      _
    %1050 = vsyncpa [#allocation3], 1

</llo_original>
